<compile_context>
chip_gen: v5e
topology: v5e:2x2
jax: 0.10.0
libtpu: 0.0.40
codegen_flags: <defaults>
</compile_context>

<pallas_src>
import functools

import jax
import jax.numpy as jnp
import numpy as np
from jax import lax
from jax.experimental import pallas as pl
from jax.experimental.pallas import tpu as pltpu


# (dh, dw, zero_fill_at_boundary) for channel groups 0..7 (shift_size == 1,
# eightneiborshift).  out[h, w] = x[h + dh, w + dw] where the source is in
# bounds; at the boundary, groups 0-3 are zero-filled while groups 4-7 keep
# the original value (the reference copies x[..., 4f:] wholesale before
# overwriting only the interior).
_SHIFTS = (
    (+1, 0, True),    # group 0: out[h] = x[h+1], last row -> 0
    (-1, 0, True),    # group 1: out[h] = x[h-1], first row -> 0
    (0, +1, True),    # group 2: out[w] = x[w+1], last col -> 0
    (0, -1, True),    # group 3: out[w] = x[w-1], first col -> 0
    (-1, -1, False),  # group 4: out[h,w] = x[h-1,w-1], boundary keeps x
    (+1, +1, False),  # group 5: out[h,w] = x[h+1,w+1], boundary keeps x
    (-1, +1, False),  # group 6: out[h,w] = x[h-1,w+1], boundary keeps x
    (+1, -1, False),  # group 7: out[h,w] = x[h+1,w-1], boundary keeps x
)


def _spatial_shift_kernel(x_ref, o_ref, *, H, W, nh, c, fold, tb):
    # x_ref / o_ref: (tb, H, W, nh, t*c) VMEM blocks.  Lane axis = t*c.
    tc = x_ref.shape[-1]

    # Static per-(head, lane) group id: lane = t_idx*c + ch, group depends only
    # on flat index head*c + ch (same grouping as the reference's M axis).
    head = lax.broadcasted_iota(jnp.int32, (nh, tc), 0)
    ch = lax.broadcasted_iota(jnp.int32, (nh, tc), 1) % c
    flat = head * c + ch
    masks = [(flat >= g * fold) & (flat < (g + 1) * fold) for g in range(8)]
    zero = jnp.zeros((), x_ref.dtype)

    def per_batch(b, carry):
        for h in range(H):
            for w in range(W):
                # Identity default: covers "rest" channels (>= 8*fold) and the
                # un-overwritten boundaries of diagonal groups 4-7.
                acc = x_ref[b, h, w]                      # (nh, t*c)
                for g, (dh, dw, zero_fill) in enumerate(_SHIFTS):
                    sh, sw = h + dh, w + dw
                    if 0 <= sh < H and 0 <= sw < W:
                        acc = jnp.where(masks[g], x_ref[b, sh, sw], acc)
                    elif zero_fill:
                        acc = jnp.where(masks[g], zero, acc)
                o_ref[b, h, w] = acc                      # one full-slab store
        return carry

    lax.fori_loop(0, tb, per_batch, 0)


def spatial_shift(x, n_segment=4, shift_size=1,
                  target_block_bytes=2 * 1024 * 1024):
    """Pallas TPU implementation of SpatialShift.forward (eightneiborshift)."""
    # TODO(synk): shift_size == 2 (24 shift groups) not implemented.
    assert shift_size == 1, "only shift_size=1 implemented"
    ns, nh, t, c = x.shape
    assert ns % n_segment == 0
    nb = ns // n_segment
    H = int(round(n_segment ** 0.5))
    assert H * H == n_segment, "n_segment must be a perfect square"
    M = nh * c
    fold = M // 16  # eightneiborshift: fold_div = ((2*1+1)**2 - 1) * 2 = 16
    assert fold >= 1, "num_heads * c must be >= 16"

    # Free reshape only -- no HBM transpose.  Minor (lane) axis is t*c.
    xg = x.reshape(nb, H, H, nh, t * c)
    itemsize = xg.dtype.itemsize
    per_batch_bytes = n_segment * nh * t * c * itemsize

    # Batch-tile size: big enough to amortize per-grid-step overhead and get
    # full-bandwidth DMAs, small enough that double-buffered in+out blocks fit
    # comfortably in scoped VMEM on v5e/v6e/v7x, and keep >= 2 grid steps so
    # both TensorCores of a v7x chip get work.
    cap = max(1, target_block_bytes // per_batch_bytes)
    if nb >= 2:
        cap = min(cap, nb // 2)
    tb = 1
    for d in range(1, nb + 1):
        if nb % d == 0 and d <= cap:
            tb = d
    grid = (nb // tb,)

    kern = functools.partial(_spatial_shift_kernel, H=H, W=H, nh=nh, c=c,
                             fold=fold, tb=tb)
    block = (tb, H, H, nh, t * c)
    out = pl.pallas_call(
        kern,
        out_shape=jax.ShapeDtypeStruct(xg.shape, xg.dtype),
        grid=grid,
        in_specs=[pl.BlockSpec(block, lambda b: (b, 0, 0, 0, 0))],
        out_specs=pl.BlockSpec(block, lambda b: (b, 0, 0, 0, 0)),
        compiler_params=pltpu.CompilerParams(
            dimension_semantics=("parallel",),
            vmem_limit_bytes=32 * 1024 * 1024),
        cost_estimate=pl.CostEstimate(
            flops=0, transcendentals=0,
            bytes_accessed=2 * x.size * itemsize),
    )(xg)

    return out.reshape(ns, nh, t, c)


def spatial_shift_reference(x, n_segment=4, shift_size=1):
    """Pure-JAX mirror of the PyTorch forward (used for verification)."""
    s = shift_size
    ns, nh, t, c = x.shape
    nb = ns // n_segment
    H = int(n_segment ** 0.5)
    M = nh * c
    f = M // 16
    xg = (x.reshape(nb, n_segment, nh, t, c)
            .transpose(0, 1, 2, 4, 3)
            .reshape(nb, H, H, M, t))
    out = jnp.zeros_like(xg)
    out = out.at[:, :-s, :, :f].set(xg[:, s:, :, :f])
    out = out.at[:, s:, :, f:2 * f].set(xg[:, :-s, :, f:2 * f])
    out = out.at[:, :, :-s, 2 * f:3 * f].set(xg[:, :, s:, 2 * f:3 * f])
    out = out.at[:, :, s:, 3 * f:4 * f].set(xg[:, :, :-s, 3 * f:4 * f])
    out = out.at[:, :, :, 4 * f:].set(xg[:, :, :, 4 * f:])
    out = out.at[:, s:, s:, 4 * f:5 * f].set(xg[:, :-s, :-s, 4 * f:5 * f])
    out = out.at[:, :-s, :-s, 5 * f:6 * f].set(xg[:, s:, s:, 5 * f:6 * f])
    out = out.at[:, s:, :-s, 6 * f:7 * f].set(xg[:, :-s, s:, 6 * f:7 * f])
    out = out.at[:, :-s, s:, 7 * f:8 * f].set(xg[:, s:, :-s, 7 * f:8 * f])
    out = (out.reshape(nb, n_segment, nh, c, t)
              .transpose(0, 1, 2, 4, 3)
              .reshape(ns, nh, t, c))
    return out


if __name__ == "__main__":
    # ns = n_batch * n_segment = 2 * 4 = 8, num_heads = 4, t = 8, c = 64
    key = jax.random.PRNGKey(0)
    x = jax.random.normal(key, (8, 4, 8, 64), dtype=jnp.float32)

    n_segment = 4
    out = spatial_shift(x, n_segment=n_segment, shift_size=1)
    out = jax.block_until_ready(out)

    ref = spatial_shift_reference(x, n_segment=n_segment, shift_size=1)
    np.testing.assert_allclose(np.asarray(out), np.asarray(ref), rtol=0, atol=0)

    print("KERNEL_OK")
</pallas_src>

<mosaic_0001>
module attributes {stable_mosaic.version = 11 : i64} {
  func.func @_spatial_shift_kernel(%arg0: i32, %arg1: memref<1x2x2x4x512xf32, #tpu.memory_space<vmem>>, %arg2: memref<1x2x2x4x512xf32, #tpu.memory_space<vmem>>) attributes {dimension_semantics = [#tpu.dimension_semantics<parallel>], iteration_bounds = array<i64: 2>, scalar_prefetch = 0 : i64, scratch_operands = 0 : i64, tpu.core_type = #tpu.core_type<tc>, window_params = [{transform_indices = @transform_0, window_bounds = array<i64: 1, 2, 2, 4, 512>}, {transform_indices = @transform_1, window_bounds = array<i64: 1, 2, 2, 4, 512>}]} {
    %0 = tpu.iota {dimensions = array<i32: 0>} : vector<4x512xi32>
    %1 = tpu.iota {dimensions = array<i32: 1>} : vector<4x512xi32>
    %c64_i32 = arith.constant 64 : i32
    %c0_i32 = arith.constant 0 : i32
    %2 = arith.cmpi eq, %c64_i32, %c0_i32 : i32
    %c1_i32 = arith.constant 1 : i32
    %3 = arith.select %2, %c1_i32, %c64_i32 : i32
    %4 = vector.broadcast %3 : i32 to vector<4x512xi32>
    %5 = arith.remsi %1, %4 : vector<4x512xi32>
    %c0_i32_0 = arith.constant 0 : i32
    %6 = vector.broadcast %c0_i32_0 : i32 to vector<4x512xi32>
    %7 = arith.cmpi ne, %5, %6 : vector<4x512xi32>
    %c0_i32_1 = arith.constant 0 : i32
    %8 = vector.broadcast %c0_i32_1 : i32 to vector<4x512xi32>
    %9 = arith.cmpi slt, %5, %8 : vector<4x512xi32>
    %c0_i32_2 = arith.constant 0 : i32
    %10 = arith.cmpi slt, %3, %c0_i32_2 : i32
    %11 = vector.broadcast %10 : i1 to vector<4x512xi1>
    %12 = vector.broadcast %11 : vector<4x512xi1> to vector<4x512xi1>
    %13 = arith.xori %9, %12 : vector<4x512xi1>
    %14 = arith.andi %13, %7 : vector<4x512xi1>
    %15 = vector.broadcast %3 : i32 to vector<4x512xi32>
    %16 = arith.addi %5, %15 : vector<4x512xi32>
    %17 = arith.select %14, %16, %5 : vector<4x512xi1>, vector<4x512xi32>
    %c64_i32_3 = arith.constant 64 : i32
    %18 = vector.broadcast %c64_i32_3 : i32 to vector<4x512xi32>
    %19 = arith.muli %0, %18 : vector<4x512xi32>
    %20 = arith.addi %19, %17 : vector<4x512xi32>
    %c0_i32_4 = arith.constant 0 : i32
    %21 = vector.broadcast %c0_i32_4 : i32 to vector<4x512xi32>
    %22 = arith.cmpi sge, %20, %21 : vector<4x512xi32>
    %c16_i32 = arith.constant 16 : i32
    %23 = vector.broadcast %c16_i32 : i32 to vector<4x512xi32>
    %24 = arith.cmpi slt, %20, %23 : vector<4x512xi32>
    %25 = arith.andi %22, %24 : vector<4x512xi1>
    %c16_i32_5 = arith.constant 16 : i32
    %26 = vector.broadcast %c16_i32_5 : i32 to vector<4x512xi32>
    %27 = arith.cmpi sge, %20, %26 : vector<4x512xi32>
    %c32_i32 = arith.constant 32 : i32
    %28 = vector.broadcast %c32_i32 : i32 to vector<4x512xi32>
    %29 = arith.cmpi slt, %20, %28 : vector<4x512xi32>
    %30 = arith.andi %27, %29 : vector<4x512xi1>
    %c32_i32_6 = arith.constant 32 : i32
    %31 = vector.broadcast %c32_i32_6 : i32 to vector<4x512xi32>
    %32 = arith.cmpi sge, %20, %31 : vector<4x512xi32>
    %c48_i32 = arith.constant 48 : i32
    %33 = vector.broadcast %c48_i32 : i32 to vector<4x512xi32>
    %34 = arith.cmpi slt, %20, %33 : vector<4x512xi32>
    %35 = arith.andi %32, %34 : vector<4x512xi1>
    %c48_i32_7 = arith.constant 48 : i32
    %36 = vector.broadcast %c48_i32_7 : i32 to vector<4x512xi32>
    %37 = arith.cmpi sge, %20, %36 : vector<4x512xi32>
    %c64_i32_8 = arith.constant 64 : i32
    %38 = vector.broadcast %c64_i32_8 : i32 to vector<4x512xi32>
    %39 = arith.cmpi slt, %20, %38 : vector<4x512xi32>
    %40 = arith.andi %37, %39 : vector<4x512xi1>
    %c64_i32_9 = arith.constant 64 : i32
    %41 = vector.broadcast %c64_i32_9 : i32 to vector<4x512xi32>
    %42 = arith.cmpi sge, %20, %41 : vector<4x512xi32>
    %c80_i32 = arith.constant 80 : i32
    %43 = vector.broadcast %c80_i32 : i32 to vector<4x512xi32>
    %44 = arith.cmpi slt, %20, %43 : vector<4x512xi32>
    %45 = arith.andi %42, %44 : vector<4x512xi1>
    %c80_i32_10 = arith.constant 80 : i32
    %46 = vector.broadcast %c80_i32_10 : i32 to vector<4x512xi32>
    %47 = arith.cmpi sge, %20, %46 : vector<4x512xi32>
    %c96_i32 = arith.constant 96 : i32
    %48 = vector.broadcast %c96_i32 : i32 to vector<4x512xi32>
    %49 = arith.cmpi slt, %20, %48 : vector<4x512xi32>
    %50 = arith.andi %47, %49 : vector<4x512xi1>
    %c96_i32_11 = arith.constant 96 : i32
    %51 = vector.broadcast %c96_i32_11 : i32 to vector<4x512xi32>
    %52 = arith.cmpi sge, %20, %51 : vector<4x512xi32>
    %c112_i32 = arith.constant 112 : i32
    %53 = vector.broadcast %c112_i32 : i32 to vector<4x512xi32>
    %54 = arith.cmpi slt, %20, %53 : vector<4x512xi32>
    %55 = arith.andi %52, %54 : vector<4x512xi1>
    %c112_i32_12 = arith.constant 112 : i32
    %56 = vector.broadcast %c112_i32_12 : i32 to vector<4x512xi32>
    %57 = arith.cmpi sge, %20, %56 : vector<4x512xi32>
    %c128_i32 = arith.constant 128 : i32
    %58 = vector.broadcast %c128_i32 : i32 to vector<4x512xi32>
    %59 = arith.cmpi slt, %20, %58 : vector<4x512xi32>
    %60 = arith.andi %57, %59 : vector<4x512xi1>
    %cst = arith.constant 0.000000e+00 : f32
    %c0_i32_13 = arith.constant 0 : i32
    %61 = arith.index_cast %c0_i32_13 : i32 to index
    %c0 = arith.constant 0 : index
    %c0_14 = arith.constant 0 : index
    %c0_15 = arith.constant 0 : index
    %c0_16 = arith.constant 0 : index
    %62 = vector.load %arg1[%61, %c0, %c0_14, %c0_15, %c0_16] : memref<1x2x2x4x512xf32, #tpu.memory_space<vmem>>, vector<1x1x1x4x512xf32>
    %63 = vector.shape_cast %62 : vector<1x1x1x4x512xf32> to vector<4x512xf32>
    %64 = arith.index_cast %c0_i32_13 : i32 to index
    %c1 = arith.constant 1 : index
    %c0_17 = arith.constant 0 : index
    %c0_18 = arith.constant 0 : index
    %c0_19 = arith.constant 0 : index
    %65 = vector.load %arg1[%64, %c1, %c0_17, %c0_18, %c0_19] : memref<1x2x2x4x512xf32, #tpu.memory_space<vmem>>, vector<1x1x1x4x512xf32>
    %66 = vector.shape_cast %65 : vector<1x1x1x4x512xf32> to vector<4x512xf32>
    %67 = arith.select %25, %66, %63 : vector<4x512xi1>, vector<4x512xf32>
    %68 = vector.broadcast %cst : f32 to vector<4x512xf32>
    %69 = arith.select %30, %68, %67 : vector<4x512xi1>, vector<4x512xf32>
    %70 = arith.index_cast %c0_i32_13 : i32 to index
    %c0_20 = arith.constant 0 : index
    %c1_21 = arith.constant 1 : index
    %c0_22 = arith.constant 0 : index
    %c0_23 = arith.constant 0 : index
    %71 = vector.load %arg1[%70, %c0_20, %c1_21, %c0_22, %c0_23] : memref<1x2x2x4x512xf32, #tpu.memory_space<vmem>>, vector<1x1x1x4x512xf32>
    %72 = vector.shape_cast %71 : vector<1x1x1x4x512xf32> to vector<4x512xf32>
    %73 = arith.select %35, %72, %69 : vector<4x512xi1>, vector<4x512xf32>
    %74 = vector.broadcast %cst : f32 to vector<4x512xf32>
    %75 = arith.select %40, %74, %73 : vector<4x512xi1>, vector<4x512xf32>
    %76 = arith.index_cast %c0_i32_13 : i32 to index
    %c1_24 = arith.constant 1 : index
    %c1_25 = arith.constant 1 : index
    %c0_26 = arith.constant 0 : index
    %c0_27 = arith.constant 0 : index
    %77 = vector.load %arg1[%76, %c1_24, %c1_25, %c0_26, %c0_27] : memref<1x2x2x4x512xf32, #tpu.memory_space<vmem>>, vector<1x1x1x4x512xf32>
    %78 = vector.shape_cast %77 : vector<1x1x1x4x512xf32> to vector<4x512xf32>
    %79 = arith.select %50, %78, %75 : vector<4x512xi1>, vector<4x512xf32>
    %80 = arith.index_cast %c0_i32_13 : i32 to index
    %c0_28 = arith.constant 0 : index
    %c0_29 = arith.constant 0 : index
    %c0_30 = arith.constant 0 : index
    %c0_31 = arith.constant 0 : index
    %81 = vector.load %arg2[%80, %c0_28, %c0_29, %c0_30, %c0_31] : memref<1x2x2x4x512xf32, #tpu.memory_space<vmem>>, vector<1x1x1x4x512xf32>
    %82 = vector.shape_cast %81 : vector<1x1x1x4x512xf32> to vector<4x512xf32>
    %83 = vector.shape_cast %79 : vector<4x512xf32> to vector<1x1x1x4x512xf32>
    tpu.vector_store %arg2[%80, %c0_28, %c0_29, %c0_30, %c0_31], %83 {strides = array<i32>} : memref<1x2x2x4x512xf32, #tpu.memory_space<vmem>>, vector<1x1x1x4x512xf32>,
    %84 = arith.index_cast %c0_i32_13 : i32 to index
    %c0_32 = arith.constant 0 : index
    %c1_33 = arith.constant 1 : index
    %c0_34 = arith.constant 0 : index
    %c0_35 = arith.constant 0 : index
    %85 = vector.load %arg1[%84, %c0_32, %c1_33, %c0_34, %c0_35] : memref<1x2x2x4x512xf32, #tpu.memory_space<vmem>>, vector<1x1x1x4x512xf32>
    %86 = vector.shape_cast %85 : vector<1x1x1x4x512xf32> to vector<4x512xf32>
    %87 = arith.index_cast %c0_i32_13 : i32 to index
    %c1_36 = arith.constant 1 : index
    %c1_37 = arith.constant 1 : index
    %c0_38 = arith.constant 0 : index
    %c0_39 = arith.constant 0 : index
    %88 = vector.load %arg1[%87, %c1_36, %c1_37, %c0_38, %c0_39] : memref<1x2x2x4x512xf32, #tpu.memory_space<vmem>>, vector<1x1x1x4x512xf32>
    %89 = vector.shape_cast %88 : vector<1x1x1x4x512xf32> to vector<4x512xf32>
    %90 = arith.select %25, %89, %86 : vector<4x512xi1>, vector<4x512xf32>
    %91 = vector.broadcast %cst : f32 to vector<4x512xf32>
    %92 = arith.select %30, %91, %90 : vector<4x512xi1>, vector<4x512xf32>
    %93 = vector.broadcast %cst : f32 to vector<4x512xf32>
    %94 = arith.select %35, %93, %92 : vector<4x512xi1>, vector<4x512xf32>
    %95 = arith.index_cast %c0_i32_13 : i32 to index
    %c0_40 = arith.constant 0 : index
    %c0_41 = arith.constant 0 : index
    %c0_42 = arith.constant 0 : index
    %c0_43 = arith.constant 0 : index
    %96 = vector.load %arg1[%95, %c0_40, %c0_41, %c0_42, %c0_43] : memref<1x2x2x4x512xf32, #tpu.memory_space<vmem>>, vector<1x1x1x4x512xf32>
    %97 = vector.shape_cast %96 : vector<1x1x1x4x512xf32> to vector<4x512xf32>
    %98 = arith.select %40, %97, %94 : vector<4x512xi1>, vector<4x512xf32>
    %99 = arith.index_cast %c0_i32_13 : i32 to index
    %c1_44 = arith.constant 1 : index
    %c0_45 = arith.constant 0 : index
    %c0_46 = arith.constant 0 : index
    %c0_47 = arith.constant 0 : index
    %100 = vector.load %arg1[%99, %c1_44, %c0_45, %c0_46, %c0_47] : memref<1x2x2x4x512xf32, #tpu.memory_space<vmem>>, vector<1x1x1x4x512xf32>
    %101 = vector.shape_cast %100 : vector<1x1x1x4x512xf32> to vector<4x512xf32>
    %102 = arith.select %60, %101, %98 : vector<4x512xi1>, vector<4x512xf32>
    %103 = arith.index_cast %c0_i32_13 : i32 to index
    %c0_48 = arith.constant 0 : index
    %c1_49 = arith.constant 1 : index
    %c0_50 = arith.constant 0 : index
    %c0_51 = arith.constant 0 : index
    %104 = vector.load %arg2[%103, %c0_48, %c1_49, %c0_50, %c0_51] : memref<1x2x2x4x512xf32, #tpu.memory_space<vmem>>, vector<1x1x1x4x512xf32>
    %105 = vector.shape_cast %104 : vector<1x1x1x4x512xf32> to vector<4x512xf32>
    %106 = vector.shape_cast %102 : vector<4x512xf32> to vector<1x1x1x4x512xf32>
    tpu.vector_store %arg2[%103, %c0_48, %c1_49, %c0_50, %c0_51], %106 {strides = array<i32>} : memref<1x2x2x4x512xf32, #tpu.memory_space<vmem>>, vector<1x1x1x4x512xf32>,
    %107 = arith.index_cast %c0_i32_13 : i32 to index
    %c1_52 = arith.constant 1 : index
    %c0_53 = arith.constant 0 : index
    %c0_54 = arith.constant 0 : index
    %c0_55 = arith.constant 0 : index
    %108 = vector.load %arg1[%107, %c1_52, %c0_53, %c0_54, %c0_55] : memref<1x2x2x4x512xf32, #tpu.memory_space<vmem>>, vector<1x1x1x4x512xf32>
    %109 = vector.shape_cast %108 : vector<1x1x1x4x512xf32> to vector<4x512xf32>
    %110 = vector.broadcast %cst : f32 to vector<4x512xf32>
    %111 = arith.select %25, %110, %109 : vector<4x512xi1>, vector<4x512xf32>
    %112 = arith.index_cast %c0_i32_13 : i32 to index
    %c0_56 = arith.constant 0 : index
    %c0_57 = arith.constant 0 : index
    %c0_58 = arith.constant 0 : index
    %c0_59 = arith.constant 0 : index
    %113 = vector.load %arg1[%112, %c0_56, %c0_57, %c0_58, %c0_59] : memref<1x2x2x4x512xf32, #tpu.memory_space<vmem>>, vector<1x1x1x4x512xf32>
    %114 = vector.shape_cast %113 : vector<1x1x1x4x512xf32> to vector<4x512xf32>
    %115 = arith.select %30, %114, %111 : vector<4x512xi1>, vector<4x512xf32>
    %116 = arith.index_cast %c0_i32_13 : i32 to index
    %c1_60 = arith.constant 1 : index
    %c1_61 = arith.constant 1 : index
    %c0_62 = arith.constant 0 : index
    %c0_63 = arith.constant 0 : index
    %117 = vector.load %arg1[%116, %c1_60, %c1_61, %c0_62, %c0_63] : memref<1x2x2x4x512xf32, #tpu.memory_space<vmem>>, vector<1x1x1x4x512xf32>
    %118 = vector.shape_cast %117 : vector<1x1x1x4x512xf32> to vector<4x512xf32>
    %119 = arith.select %35, %118, %115 : vector<4x512xi1>, vector<4x512xf32>
    %120 = vector.broadcast %cst : f32 to vector<4x512xf32>
    %121 = arith.select %40, %120, %119 : vector<4x512xi1>, vector<4x512xf32>
    %122 = arith.index_cast %c0_i32_13 : i32 to index
    %c0_64 = arith.constant 0 : index
    %c1_65 = arith.constant 1 : index
    %c0_66 = arith.constant 0 : index
    %c0_67 = arith.constant 0 : index
    %123 = vector.load %arg1[%122, %c0_64, %c1_65, %c0_66, %c0_67] : memref<1x2x2x4x512xf32, #tpu.memory_space<vmem>>, vector<1x1x1x4x512xf32>
    %124 = vector.shape_cast %123 : vector<1x1x1x4x512xf32> to vector<4x512xf32>
    %125 = arith.select %55, %124, %121 : vector<4x512xi1>, vector<4x512xf32>
    %126 = arith.index_cast %c0_i32_13 : i32 to index
    %c1_68 = arith.constant 1 : index
    %c0_69 = arith.constant 0 : index
    %c0_70 = arith.constant 0 : index
    %c0_71 = arith.constant 0 : index
    %127 = vector.load %arg2[%126, %c1_68, %c0_69, %c0_70, %c0_71] : memref<1x2x2x4x512xf32, #tpu.memory_space<vmem>>, vector<1x1x1x4x512xf32>
    %128 = vector.shape_cast %127 : vector<1x1x1x4x512xf32> to vector<4x512xf32>
    %129 = vector.shape_cast %125 : vector<4x512xf32> to vector<1x1x1x4x512xf32>
    tpu.vector_store %arg2[%126, %c1_68, %c0_69, %c0_70, %c0_71], %129 {strides = array<i32>} : memref<1x2x2x4x512xf32, #tpu.memory_space<vmem>>, vector<1x1x1x4x512xf32>,
    %130 = arith.index_cast %c0_i32_13 : i32 to index
    %c1_72 = arith.constant 1 : index
    %c1_73 = arith.constant 1 : index
    %c0_74 = arith.constant 0 : index
    %c0_75 = arith.constant 0 : index
    %131 = vector.load %arg1[%130, %c1_72, %c1_73, %c0_74, %c0_75] : memref<1x2x2x4x512xf32, #tpu.memory_space<vmem>>, vector<1x1x1x4x512xf32>
    %132 = vector.shape_cast %131 : vector<1x1x1x4x512xf32> to vector<4x512xf32>
    %133 = vector.broadcast %cst : f32 to vector<4x512xf32>
    %134 = arith.select %25, %133, %132 : vector<4x512xi1>, vector<4x512xf32>
    %135 = arith.index_cast %c0_i32_13 : i32 to index
    %c0_76 = arith.constant 0 : index
    %c1_77 = arith.constant 1 : index
    %c0_78 = arith.constant 0 : index
    %c0_79 = arith.constant 0 : index
    %136 = vector.load %arg1[%135, %c0_76, %c1_77, %c0_78, %c0_79] : memref<1x2x2x4x512xf32, #tpu.memory_space<vmem>>, vector<1x1x1x4x512xf32>
    %137 = vector.shape_cast %136 : vector<1x1x1x4x512xf32> to vector<4x512xf32>
    %138 = arith.select %30, %137, %134 : vector<4x512xi1>, vector<4x512xf32>
    %139 = vector.broadcast %cst : f32 to vector<4x512xf32>
    %140 = arith.select %35, %139, %138 : vector<4x512xi1>, vector<4x512xf32>
    %141 = arith.index_cast %c0_i32_13 : i32 to index
    %c1_80 = arith.constant 1 : index
    %c0_81 = arith.constant 0 : index
    %c0_82 = arith.constant 0 : index
    %c0_83 = arith.constant 0 : index
    %142 = vector.load %arg1[%141, %c1_80, %c0_81, %c0_82, %c0_83] : memref<1x2x2x4x512xf32, #tpu.memory_space<vmem>>, vector<1x1x1x4x512xf32>
    %143 = vector.shape_cast %142 : vector<1x1x1x4x512xf32> to vector<4x512xf32>
    %144 = arith.select %40, %143, %140 : vector<4x512xi1>, vector<4x512xf32>
    %145 = arith.index_cast %c0_i32_13 : i32 to index
    %c0_84 = arith.constant 0 : index
    %c0_85 = arith.constant 0 : index
    %c0_86 = arith.constant 0 : index
    %c0_87 = arith.constant 0 : index
    %146 = vector.load %arg1[%145, %c0_84, %c0_85, %c0_86, %c0_87] : memref<1x2x2x4x512xf32, #tpu.memory_space<vmem>>, vector<1x1x1x4x512xf32>
    %147 = vector.shape_cast %146 : vector<1x1x1x4x512xf32> to vector<4x512xf32>
    %148 = arith.select %45, %147, %144 : vector<4x512xi1>, vector<4x512xf32>
    %149 = arith.index_cast %c0_i32_13 : i32 to index
    %c1_88 = arith.constant 1 : index
    %c1_89 = arith.constant 1 : index
    %c0_90 = arith.constant 0 : index
    %c0_91 = arith.constant 0 : index
    %150 = vector.load %arg2[%149, %c1_88, %c1_89, %c0_90, %c0_91] : memref<1x2x2x4x512xf32, #tpu.memory_space<vmem>>, vector<1x1x1x4x512xf32>
    %151 = vector.shape_cast %150 : vector<1x1x1x4x512xf32> to vector<4x512xf32>
    %152 = vector.shape_cast %148 : vector<4x512xf32> to vector<1x1x1x4x512xf32>
    tpu.vector_store %arg2[%149, %c1_88, %c1_89, %c0_90, %c0_91], %152 {strides = array<i32>} : memref<1x2x2x4x512xf32, #tpu.memory_space<vmem>>, vector<1x1x1x4x512xf32>,
    %c1_i32_92 = arith.constant 1 : i32
    return
  }
  func.func @transform_0(%arg0: i32) -> (i32, i32, i32, i32, i32) {
    %c0_i32 = arith.constant 0 : i32
    %c0_i32_0 = arith.constant 0 : i32
    %c0_i32_1 = arith.constant 0 : i32
    %c0_i32_2 = arith.constant 0 : i32
    %c0_i32_3 = arith.constant 0 : i32
    return %arg0, %c0_i32, %c0_i32_0, %c0_i32_1, %c0_i32_2 : i32, i32, i32, i32, i32
  }
  func.func @transform_1(%arg0: i32) -> (i32, i32, i32, i32, i32) {
    %c0_i32 = arith.constant 0 : i32
    %c0_i32_0 = arith.constant 0 : i32
    %c0_i32_1 = arith.constant 0 : i32
    %c0_i32_2 = arith.constant 0 : i32
    %c0_i32_3 = arith.constant 0 : i32
    return %arg0, %c0_i32, %c0_i32_0, %c0_i32_1, %c0_i32_2 : i32, i32, i32, i32, i32
  }
}

</mosaic_0001>

<llo_original>
// kernel: tpu_custom_call.1
$region0: #{tpu_custom_call.1}
  #allocation0 [shape = 'u32[]', space=smem, size = 0x4, offset = 0x4, fixed_abs, tag = 'smem constant byte address 0x4 - core index']
  #allocation1 [shape = 'u32[72,128]{1,0:T(1,128)}', space=vmem, size = 0x9000, scoped, tag = 'internal scratch']
  %s0 = inlined_call_operand.hbm [shape: f32[2,2,2,4,512], index: 0, kind: input, shape index: {}]
  %s1 = inlined_call_operand.hbm [shape: f32[2,2,2,4,512], index: 1, kind: output, shape index: {}]
  %s2 = sld [smem:[#allocation0]]
  $region41: #{tpu_custom_call.1} parent=0
    _
  %s4 = ssub.s32 1, %s2
  %s5 = scalar_select 0, %s4, %s2
  $region1: #{tpu_custom_call.1} parent=0
    #allocation2 [shape = 'u8[65536]{0}', space=vmem, size = 0x10000, scoped, tag = 'input window, operand 0']
    #allocation3 [shape = 's32[2]{0}', space=sflag, size = 0x8, scoped, tag = 'scoped memory for tpu_custom_call.1']
    #allocation4 [shape = 's32[2]{0}', space=sflag, size = 0x8, scoped, tag = 'scoped memory for tpu_custom_call.1']
    #allocation5 [shape = 'u8[65536]{0}', space=vmem, size = 0x10000, scoped, tag = 'output window, operand 0']
    %6 = vsyncpa [#allocation3], 0
    %s7 = scalar_lea.sflag [#allocation3], 1
    %8 = vsyncpa %s7, 0
    %9 = vsyncpa [#allocation4], 0
    %s10 = scalar_lea.sflag [#allocation4], 1
    %11 = vsyncpa %s10, 0
    loop: start=0, step=1, limit=4
    $region2: #{tpu_custom_call.1} parent=1 // loop_pre_header
      _
    $region3: #{tpu_custom_call.1} parent=1 // loop_header
      %s13 = sphi 0, %s17
      %p14 = scmp.ge.s32.totalorder %s13, 4
      %s23 = sphi 0, %s25
      %s26 = sphi 0, %s23
      %s27 = sphi 0, %s26
      %s43 = sphi 0, %s27
      %s49 = sphi 0, %s51
      %s52 = sphi 0, %s49
      %s53 = sphi 0, %s52
      %s69 = sphi 0, %s53
    $region4: #{tpu_custom_call.1} parent=1 // loop_header_branch
      %16 = sbr.rel (%p14) target = $region8
    $region5: #{tpu_custom_call.1} parent=1 // loop_body
      %s18 = ssub.s32 %s13, 1
      %s19 = ssub.s32 %s13, 2
      %s20 = sadd.s32 %s13, 1
      %s21 = ssub.s32 %s13, %s20
      %p22 = scmp.eq.s32.totalorder %s21, 0
      %s24 = sadd.s32 %s23, 1
      %s25 = scalar_select %p22, %s23, %s24
      %p28 = pneg %p22
      %p29 = scmp.eq.s32.totalorder %s13, 1
      %p30 = por %p28, %p29
      %p31 = scmp.ne.s32.totalorder %s23, %s26
      %p32 = scmp.eq.s32.totalorder %s13, 0
      %p33 = por %p31, %p32
      %p34 = scmp.ne.s32.totalorder %s23, %s26
      %p35 = scmp.eq.s32.totalorder %s18, 1
      %p36 = por %p34, %p35
      %p37 = scmp.ne.s32.totalorder %s26, %s27
      %p38 = scmp.eq.s32.totalorder %s18, 0
      %p39 = por %p37, %p38
      %p40 = scmp.ne.s32.totalorder %s26, %s27
      %p41 = scmp.eq.s32.totalorder %s19, 1
      %p42 = por %p40, %p41
      %p44 = scmp.ne.s32.totalorder %s27, %s43
      %p45 = scmp.eq.s32.totalorder %s19, 0
      %p46 = por %p44, %p45
      %s47 = ssub.s32 %s13, %s20
      %p48 = scmp.eq.s32.totalorder %s47, 0
      %s50 = sadd.s32 %s49, 1
      %s51 = scalar_select %p48, %s49, %s50
      %p54 = pneg %p48
      %p55 = scmp.eq.s32.totalorder %s13, 1
      %p56 = por %p54, %p55
      %p57 = scmp.ne.s32.totalorder %s49, %s52
      %p58 = scmp.eq.s32.totalorder %s13, 0
      %p59 = por %p57, %p58
      %p60 = scmp.ne.s32.totalorder %s49, %s52
      %p61 = scmp.eq.s32.totalorder %s18, 1
      %p62 = por %p60, %p61
      %p63 = scmp.ne.s32.totalorder %s52, %s53
      %p64 = scmp.eq.s32.totalorder %s18, 0
      %p65 = por %p63, %p64
      %p66 = scmp.ne.s32.totalorder %s52, %s53
      %p67 = scmp.eq.s32.totalorder %s19, 1
      %p68 = por %p66, %p67
      %p70 = scmp.ne.s32.totalorder %s53, %s69
      %p71 = scmp.eq.s32.totalorder %s19, 0
      %p72 = por %p70, %p71
      %p73 = scmp.le.s32.totalorder 1, %s13
      %p74 = scmp.lt.s32.totalorder %s13, 3
      %p75 = pnand %p73, %p74
      %p76 = pneg %p75
      // Predicated region
      $region9: #{tpu_custom_call.1} parent=5 // pred_check
        _
      $region10: #{tpu_custom_call.1} parent=5 // pred_check_branch
        %78 = sbr.rel (%p75) target = $region12
      $region11: #{tpu_custom_call.1} parent=5 // pred_region
        %s79 = ssub.s32 %s13, 1
      $region12: #{tpu_custom_call.1} parent=5 // pred_fallthru
        _
      %p80 = scmp.lt.s32.totalorder %s13, 2
      // Predicated region
      $region13: #{tpu_custom_call.1} parent=5 // pred_check
        %p81 = pneg %p80
      $region14: #{tpu_custom_call.1} parent=5 // pred_check_branch
        %83 = sbr.rel (%p81) target = $region16
      $region15: #{tpu_custom_call.1} parent=5 // pred_region
        // Predicated region
        $region17: #{tpu_custom_call.1} parent=15 // pred_check
          %p84 = pneg %p33
        $region18: #{tpu_custom_call.1} parent=15 // pred_check_branch
          %86 = sbr.rel (%p84) target = $region20
        $region19: #{tpu_custom_call.1} parent=15 // pred_region
          %s87 = sand.u32 %s23, 1
          %s88 = scalar_lea.sflag [#allocation3], %s87
          %s89 = sand.u32 %s23, 1
          %s90 = smul.addr %s89, 64
          %s91 = scalar_lea.vmem [#allocation2], %s90
          %93 = vsyncadd %s88, 0
          %s94 = smul.addr %s13, 16
          %s95 = smul.addr %s94, 4
          %s96 = scalar_lea.hbm %s0, %s95
          %s97 = sshll.u32 %s96, 4
          %s98 = int_to_ptr.hbm [resolvable:$true] %s97
          %s99 = sshll.u32 %s91, 4
          %s100 = int_to_ptr.vmem [resolvable:$true] %s99
          %105 = dma.hbm_to_vmem [thread:$0]  %s98, 1024, %s100, %s88, 256, 256, 16
        $region20: #{tpu_custom_call.1} parent=15 // pred_fallthru
          _
      $region16: #{tpu_custom_call.1} parent=5 // pred_fallthru
        _
      %p106 = scmp.le.s32.totalorder 1, %s13
      %p107 = scmp.lt.s32.totalorder %s13, 3
      %p108 = pnand %p106, %p107
      %p109 = pneg %p108
      // Predicated region
      $region21: #{tpu_custom_call.1} parent=5 // pred_check
        _
      $region22: #{tpu_custom_call.1} parent=5 // pred_check_branch
        %111 = sbr.rel (%p108) target = $region24
      $region23: #{tpu_custom_call.1} parent=5 // pred_region
        %s112 = ssub.s32 %s13, 1
        %s113 = sand.u32 %s26, 1
        %s114 = scalar_lea.sflag [#allocation3], %s113
        %s115 = sand.u32 %s26, 1
        %s116 = smul.addr %s115, 64
        %s117 = scalar_lea.vmem [#allocation2], %s116
        // Predicated region
        $region25: #{tpu_custom_call.1} parent=23 // pred_check
          %p118 = pneg %p39
        $region26: #{tpu_custom_call.1} parent=23 // pred_check_branch
          %120 = sbr.rel (%p118) target = $region28
        $region27: #{tpu_custom_call.1} parent=23 // pred_region
          %122 = dma.done %s114, 1024
        $region28: #{tpu_custom_call.1} parent=23 // pred_fallthru
          _
        %s123 = sand.u32 %s26, 1
        %s124 = scalar_lea.sflag [#allocation3], %s123
        %s125 = sand.u32 %s26, 1
        %s126 = smul.addr %s125, 64
        %s127 = scalar_lea.vmem [#allocation2], %s126
        %p128 = pneg %p39
        %p129 = pneg %p36
        %p130 = pneg %p65
        %p131 = pneg %p62
        %s132 = sand.u32 %s52, 1
        %s133 = scalar_lea.sflag [#allocation4], %s132
        %s134 = sand.u32 %s52, 1
        %s135 = smul.addr %s134, 64
        %s136 = scalar_lea.vmem [#allocation5], %s135
        %v137 = vlaneseq
        %v138 = vshrl.u32 %v137, 7
        %v139 = vlaneseq
        %v140 = vand.u32 %v139, 127
        %v141 = vadd.s32 %v140, 128
        %v142 = vadd.s32 %v140, 256
        %v143 = vadd.s32 %v140, 384
        %vm144 = vcmp.lt.s32.totalorder %v140, 0
        %v145 = vsub.s32 0, %v140
        %v146 = vsel %vm144, %v145, %v140
        %v147 = vshrl.u32 %v146, 6
        %v148 = vand.u32 %v146, 63
        %v149 = vsub.s32 0, %v148
        %v150 = vsel %vm144, %v149, %v148
        %vm151 = vcmp.lt.s32.totalorder %v141, 0
        %v152 = vsub.s32 0, %v141
        %v153 = vsel %vm151, %v152, %v141
        %v154 = vshrl.u32 %v153, 6
        %v155 = vand.u32 %v153, 63
        %v156 = vsub.s32 0, %v155
        %v157 = vsel %vm151, %v156, %v155
        %vm158 = vcmp.lt.s32.totalorder %v142, 0
        %v159 = vsub.s32 0, %v142
        %v160 = vsel %vm158, %v159, %v142
        %v161 = vshrl.u32 %v160, 6
        %v162 = vand.u32 %v160, 63
        %v163 = vsub.s32 0, %v162
        %v164 = vsel %vm158, %v163, %v162
        %vm165 = vcmp.lt.s32.totalorder %v143, 0
        %v166 = vsub.s32 0, %v143
        %v167 = vsel %vm165, %v166, %v143
        %v168 = vshrl.u32 %v167, 6
        %v169 = vand.u32 %v167, 63
        %v170 = vsub.s32 0, %v169
        %v171 = vsel %vm165, %v170, %v169
        %vm172 = vcmp.ne.s32.totalorder %v150, 0
        %vm173 = vcmp.ne.s32.totalorder %v157, 0
        %vm174 = vcmp.ne.s32.totalorder %v164, 0
        %vm175 = vcmp.ne.s32.totalorder %v171, 0
        %vm176 = vcmp.lt.s32.totalorder %v150, 0
        %vm177 = vcmp.lt.s32.totalorder %v157, 0
        %vm178 = vcmp.lt.s32.totalorder %v164, 0
        %vm179 = vcmp.lt.s32.totalorder %v171, 0
        %vm180 = vmand %vm176, %vm172
        %vm181 = vmand %vm177, %vm173
        %vm182 = vmand %vm178, %vm174
        %vm183 = vmand %vm179, %vm175
        %v184 = vadd.s32 %v150, 64
        %v185 = vadd.s32 %v157, 64
        %v186 = vadd.s32 %v164, 64
        %v187 = vadd.s32 %v171, 64
        %v188 = vsel %vm180, %v184, %v150
        %v189 = vsel %vm181, %v185, %v157
        %v190 = vsel %vm182, %v186, %v164
        %v191 = vsel %vm183, %v187, %v171
        %v192 = vmul.u32 %v138, 64
        %v193 = vadd.s32 %v192, %v188
        %v194 = vadd.s32 %v192, %v189
        %v195 = vadd.s32 %v192, %v190
        %v196 = vadd.s32 %v192, %v191
        %vm197 = vcmp.ge.s32.totalorder %v193, 0
        %vm198 = vcmp.ge.s32.totalorder %v194, 0
        %vm199 = vcmp.ge.s32.totalorder %v195, 0
        %vm200 = vcmp.ge.s32.totalorder %v196, 0
        %vm201 = vcmp.lt.s32.totalorder %v193, 16
        %vm202 = vcmp.lt.s32.totalorder %v194, 16
        %vm203 = vcmp.lt.s32.totalorder %v195, 16
        %vm204 = vcmp.lt.s32.totalorder %v196, 16
        %vm205 = vmand %vm197, %vm201
        %vm206 = vmand %vm198, %vm202
        %vm207 = vmand %vm199, %vm203
        %vm208 = vmand %vm200, %vm204
        %vm209 = vcmp.ge.s32.totalorder %v193, 16
        %vm210 = vcmp.ge.s32.totalorder %v194, 16
        %vm211 = vcmp.ge.s32.totalorder %v195, 16
        %vm212 = vcmp.ge.s32.totalorder %v196, 16
        %vm213 = vcmp.lt.s32.totalorder %v193, 32
        %vm214 = vcmp.lt.s32.totalorder %v194, 32
        %vm215 = vcmp.lt.s32.totalorder %v195, 32
        %vm216 = vcmp.lt.s32.totalorder %v196, 32
        %vm217 = vmand %vm209, %vm213
        %vm218 = vmand %vm210, %vm214
        %vm219 = vmand %vm211, %vm215
        %vm220 = vmand %vm212, %vm216
        %vm221 = vcmp.ge.s32.totalorder %v193, 32
        %vm222 = vcmp.ge.s32.totalorder %v194, 32
        %vm223 = vcmp.ge.s32.totalorder %v195, 32
        %vm224 = vcmp.ge.s32.totalorder %v196, 32
        %vm225 = vcmp.lt.s32.totalorder %v193, 48
        %vm226 = vcmp.lt.s32.totalorder %v194, 48
        %vm227 = vcmp.lt.s32.totalorder %v195, 48
        %vm228 = vcmp.lt.s32.totalorder %v196, 48
        %vm229 = vmand %vm221, %vm225
        %vm230 = vmand %vm222, %vm226
        %vm231 = vmand %vm223, %vm227
        %vm232 = vmand %vm224, %vm228
        %vm233 = vcmp.ge.s32.totalorder %v193, 48
        %vm234 = vcmp.ge.s32.totalorder %v194, 48
        %vm235 = vcmp.ge.s32.totalorder %v195, 48
        %vm236 = vcmp.ge.s32.totalorder %v196, 48
        %vm237 = vcmp.lt.s32.totalorder %v193, 64
        %vm238 = vcmp.lt.s32.totalorder %v194, 64
        %vm239 = vcmp.lt.s32.totalorder %v195, 64
        %vm240 = vcmp.lt.s32.totalorder %v196, 64
        %vm241 = vmand %vm233, %vm237
        %vm242 = vmand %vm234, %vm238
        %vm243 = vmand %vm235, %vm239
        %vm244 = vmand %vm236, %vm240
        %vm245 = vcmp.ge.s32.totalorder %v193, 64
        %vm246 = vcmp.ge.s32.totalorder %v194, 64
        %vm247 = vcmp.ge.s32.totalorder %v195, 64
        %vm248 = vcmp.ge.s32.totalorder %v196, 64
        %vm249 = vcmp.lt.s32.totalorder %v193, 80
        %vm250 = vcmp.lt.s32.totalorder %v194, 80
        %vm251 = vcmp.lt.s32.totalorder %v195, 80
        %vm252 = vcmp.lt.s32.totalorder %v196, 80
        %vm253 = vmand %vm245, %vm249
        %vm254 = vmand %vm246, %vm250
        %vm255 = vmand %vm247, %vm251
        %vm256 = vmand %vm248, %vm252
        %vm257 = vcmp.ge.s32.totalorder %v193, 80
        %vm258 = vcmp.ge.s32.totalorder %v194, 80
        %vm259 = vcmp.ge.s32.totalorder %v195, 80
        %vm260 = vcmp.ge.s32.totalorder %v196, 80
        %vm261 = vcmp.lt.s32.totalorder %v193, 96
        %vm262 = vcmp.lt.s32.totalorder %v194, 96
        %vm263 = vcmp.lt.s32.totalorder %v195, 96
        %vm264 = vcmp.lt.s32.totalorder %v196, 96
        %vm265 = vmand %vm257, %vm261
        %vm266 = vmand %vm258, %vm262
        %vm267 = vmand %vm259, %vm263
        %vm268 = vmand %vm260, %vm264
        %vm269 = vcmp.ge.s32.totalorder %v193, 96
        %vm270 = vcmp.ge.s32.totalorder %v194, 96
        %vm271 = vcmp.ge.s32.totalorder %v195, 96
        %vm272 = vcmp.ge.s32.totalorder %v196, 96
        %vm273 = vcmp.lt.s32.totalorder %v193, 112
        %vm274 = vcmp.lt.s32.totalorder %v194, 112
        %vm275 = vcmp.lt.s32.totalorder %v195, 112
        %vm276 = vcmp.lt.s32.totalorder %v196, 112
        %vm277 = vmand %vm269, %vm273
        %vm278 = vmand %vm270, %vm274
        %vm279 = vmand %vm271, %vm275
        %vm280 = vmand %vm272, %vm276
        %vm281 = vcmp.ge.s32.totalorder %v193, 112
        %vm282 = vcmp.ge.s32.totalorder %v194, 112
        %vm283 = vcmp.ge.s32.totalorder %v195, 112
        %vm284 = vcmp.ge.s32.totalorder %v196, 112
        %vm285 = vcmp.lt.s32.totalorder %v193, 128
        %vm286 = vcmp.lt.s32.totalorder %v194, 128
        %vm287 = vcmp.lt.s32.totalorder %v195, 128
        %vm288 = vcmp.lt.s32.totalorder %v196, 128
        %vm289 = vmand %vm281, %vm285
        %vm290 = vmand %vm282, %vm286
        %vm291 = vmand %vm283, %vm287
        %vm292 = vmand %vm284, %vm288
        %v293 = vld [vmem:[%s117] sm:$0xff]
        %v294 = vld [vmem:[%s117 + $0x8] sm:$0xff]
        %s295 = scalar_lea.vmem %s117, 32 [#allocation2]
        %v296 = vld [vmem:[%s295] sm:$0xff]
        %v297 = vld [vmem:[%s295 + $0x8] sm:$0xff]
        %300 = vst [vmem:[#allocation1] ss:$2 sm:$0xff] %v296
        %s301 = scalar_lea.vmem [#allocation1], 16
        %302 = vst [vmem:[%s301] ss:$2 sm:$0xff] %v297
        %v303 = vld.sshfl [vmem:[#allocation1] sm:$0xff pattern:$0x75316420]
        %v304 = vld.sshfl [vmem:[#allocation1 + $0x8] sm:$0xff pattern:$0x75316420]
        %v305 = vld.sshfl [vmem:[#allocation1 + $0x10] sm:$0xff pattern:$0x75316420]
        %v306 = vld.sshfl [vmem:[#allocation1 + $0x18] sm:$0xff pattern:$0x75316420]
        %313 = vst [vmem:[#allocation1] ss:$2 sm:$0xff] %v293
        %s314 = scalar_lea.vmem [#allocation1], 16
        %315 = vst [vmem:[%s314] ss:$2 sm:$0xff] %v294
        %v316 = vld.sshfl [vmem:[#allocation1] sm:$0xff pattern:$0x75316420]
        %v317 = vld.sshfl [vmem:[#allocation1 + $0x8] sm:$0xff pattern:$0x75316420]
        %v318 = vld.sshfl [vmem:[#allocation1 + $0x10] sm:$0xff pattern:$0x75316420]
        %v319 = vld.sshfl [vmem:[#allocation1 + $0x18] sm:$0xff pattern:$0x75316420]
        %v324 = vsel %vm205, %v303, %v316
        %v325 = vsel %vm206, %v304, %v317
        %v326 = vsel %vm207, %v305, %v318
        %v327 = vsel %vm208, %v306, %v319
        %v328 = vsel %vm217, 0.0, %v324
        %v329 = vsel %vm218, 0.0, %v325
        %v330 = vsel %vm219, 0.0, %v326
        %v331 = vsel %vm220, 0.0, %v327
        %s332 = scalar_lea.vmem %s117, 16 [#allocation2]
        %v333 = vld [vmem:[%s332] sm:$0xff]
        %v334 = vld [vmem:[%s332 + $0x8] sm:$0xff]
        %337 = vst [vmem:[#allocation1] ss:$2 sm:$0xff] %v333
        %s338 = scalar_lea.vmem [#allocation1], 16
        %339 = vst [vmem:[%s338] ss:$2 sm:$0xff] %v334
        %v340 = vld.sshfl [vmem:[#allocation1] sm:$0xff pattern:$0x75316420]
        %v341 = vld.sshfl [vmem:[#allocation1 + $0x8] sm:$0xff pattern:$0x75316420]
        %v342 = vld.sshfl [vmem:[#allocation1 + $0x10] sm:$0xff pattern:$0x75316420]
        %v343 = vld.sshfl [vmem:[#allocation1 + $0x18] sm:$0xff pattern:$0x75316420]
        %v348 = vsel %vm229, %v340, %v328
        %v349 = vsel %vm230, %v341, %v329
        %v350 = vsel %vm231, %v342, %v330
        %v351 = vsel %vm232, %v343, %v331
        %v352 = vsel %vm241, 0.0, %v348
        %v353 = vsel %vm242, 0.0, %v349
        %v354 = vsel %vm243, 0.0, %v350
        %v355 = vsel %vm244, 0.0, %v351
        %s356 = scalar_lea.vmem %s117, 48 [#allocation2]
        %v357 = vld [vmem:[%s356] sm:$0xff]
        %v358 = vld [vmem:[%s356 + $0x8] sm:$0xff]
        %361 = vst [vmem:[#allocation1] ss:$2 sm:$0xff] %v357
        %s362 = scalar_lea.vmem [#allocation1], 16
        %363 = vst [vmem:[%s362] ss:$2 sm:$0xff] %v358
        %v364 = vld.sshfl [vmem:[#allocation1] sm:$0xff pattern:$0x75316420]
        %v365 = vld.sshfl [vmem:[#allocation1 + $0x8] sm:$0xff pattern:$0x75316420]
        %v366 = vld.sshfl [vmem:[#allocation1 + $0x10] sm:$0xff pattern:$0x75316420]
        %v367 = vld.sshfl [vmem:[#allocation1 + $0x18] sm:$0xff pattern:$0x75316420]
        %v372 = vsel %vm265, %v364, %v352
        %v373 = vsel %vm266, %v365, %v353
        %v374 = vsel %vm267, %v366, %v354
        %v375 = vsel %vm268, %v367, %v355
        %v380 = vrot.slane %v373, 4
        %v381 = vrot.slane %v375, 4
        %vm382 = vcmask 1043456
        %v383 = vsel %vm382, %v372, %v380
        %v384 = vsel %vm382, %v374, %v381
        %387 = vst [vmem:[%s136] sm:$0xff] %v383
        %388 = vst [vmem:[%s136 + $0x8] sm:$0xff] %v384
        %v389 = vld [vmem:[%s332] sm:$0xff]
        %v390 = vld [vmem:[%s332 + $0x8] sm:$0xff]
        %v391 = vld [vmem:[%s356] sm:$0xff]
        %v392 = vld [vmem:[%s356 + $0x8] sm:$0xff]
        %395 = vst [vmem:[#allocation1] ss:$2 sm:$0xff] %v391
        %s396 = scalar_lea.vmem [#allocation1], 16
        %397 = vst [vmem:[%s396] ss:$2 sm:$0xff] %v392
        %v398 = vld.sshfl [vmem:[#allocation1] sm:$0xff pattern:$0x75316420]
        %v399 = vld.sshfl [vmem:[#allocation1 + $0x8] sm:$0xff pattern:$0x75316420]
        %v400 = vld.sshfl [vmem:[#allocation1 + $0x10] sm:$0xff pattern:$0x75316420]
        %v401 = vld.sshfl [vmem:[#allocation1 + $0x18] sm:$0xff pattern:$0x75316420]
        %408 = vst [vmem:[#allocation1] ss:$2 sm:$0xff] %v389
        %s409 = scalar_lea.vmem [#allocation1], 16
        %410 = vst [vmem:[%s409] ss:$2 sm:$0xff] %v390
        %v411 = vld.sshfl [vmem:[#allocation1] sm:$0xff pattern:$0x75316420]
        %v412 = vld.sshfl [vmem:[#allocation1 + $0x8] sm:$0xff pattern:$0x75316420]
        %v413 = vld.sshfl [vmem:[#allocation1 + $0x10] sm:$0xff pattern:$0x75316420]
        %v414 = vld.sshfl [vmem:[#allocation1 + $0x18] sm:$0xff pattern:$0x75316420]
        %v419 = vsel %vm205, %v398, %v411
        %v420 = vsel %vm206, %v399, %v412
        %v421 = vsel %vm207, %v400, %v413
        %v422 = vsel %vm208, %v401, %v414
        %v423 = vsel %vm217, 0.0, %v419
        %v424 = vsel %vm218, 0.0, %v420
        %v425 = vsel %vm219, 0.0, %v421
        %v426 = vsel %vm220, 0.0, %v422
        %v427 = vsel %vm229, 0.0, %v423
        %v428 = vsel %vm230, 0.0, %v424
        %v429 = vsel %vm231, 0.0, %v425
        %v430 = vsel %vm232, 0.0, %v426
        %v431 = vld [vmem:[%s117] sm:$0xff]
        %v432 = vld [vmem:[%s117 + $0x8] sm:$0xff]
        %435 = vst [vmem:[#allocation1] ss:$2 sm:$0xff] %v431
        %s436 = scalar_lea.vmem [#allocation1], 16
        %437 = vst [vmem:[%s436] ss:$2 sm:$0xff] %v432
        %v438 = vld.sshfl [vmem:[#allocation1] sm:$0xff pattern:$0x75316420]
        %v439 = vld.sshfl [vmem:[#allocation1 + $0x8] sm:$0xff pattern:$0x75316420]
        %v440 = vld.sshfl [vmem:[#allocation1 + $0x10] sm:$0xff pattern:$0x75316420]
        %v441 = vld.sshfl [vmem:[#allocation1 + $0x18] sm:$0xff pattern:$0x75316420]
        %v446 = vsel %vm241, %v438, %v427
        %v447 = vsel %vm242, %v439, %v428
        %v448 = vsel %vm243, %v440, %v429
        %v449 = vsel %vm244, %v441, %v430
        %v450 = vld [vmem:[%s295] sm:$0xff]
        %v451 = vld [vmem:[%s295 + $0x8] sm:$0xff]
        %454 = vst [vmem:[#allocation1] ss:$2 sm:$0xff] %v450
        %s455 = scalar_lea.vmem [#allocation1], 16
        %456 = vst [vmem:[%s455] ss:$2 sm:$0xff] %v451
        %v457 = vld.sshfl [vmem:[#allocation1] sm:$0xff pattern:$0x75316420]
        %v458 = vld.sshfl [vmem:[#allocation1 + $0x8] sm:$0xff pattern:$0x75316420]
        %v459 = vld.sshfl [vmem:[#allocation1 + $0x10] sm:$0xff pattern:$0x75316420]
        %v460 = vld.sshfl [vmem:[#allocation1 + $0x18] sm:$0xff pattern:$0x75316420]
        %v465 = vsel %vm289, %v457, %v446
        %v466 = vsel %vm290, %v458, %v447
        %v467 = vsel %vm291, %v459, %v448
        %v468 = vsel %vm292, %v460, %v449
        %v473 = vrot.slane %v466, 4
        %v474 = vrot.slane %v468, 4
        %v475 = vsel %vm382, %v465, %v473
        %v476 = vsel %vm382, %v467, %v474
        %s479 = scalar_lea.vmem %s136, 16 [#allocation5]
        %480 = vst [vmem:[%s479] sm:$0xff] %v475
        %481 = vst [vmem:[%s479 + $0x8] sm:$0xff] %v476
        %v482 = vld [vmem:[%s295] sm:$0xff]
        %v483 = vld [vmem:[%s295 + $0x8] sm:$0xff]
        %486 = vst [vmem:[#allocation1] ss:$2 sm:$0xff] %v482
        %s487 = scalar_lea.vmem [#allocation1], 16
        %488 = vst [vmem:[%s487] ss:$2 sm:$0xff] %v483
        %v489 = vld.sshfl [vmem:[#allocation1] sm:$0xff pattern:$0x75316420]
        %v490 = vld.sshfl [vmem:[#allocation1 + $0x8] sm:$0xff pattern:$0x75316420]
        %v491 = vld.sshfl [vmem:[#allocation1 + $0x10] sm:$0xff pattern:$0x75316420]
        %v492 = vld.sshfl [vmem:[#allocation1 + $0x18] sm:$0xff pattern:$0x75316420]
        %v497 = vsel %vm205, 0.0, %v489
        %v498 = vsel %vm206, 0.0, %v490
        %v499 = vsel %vm207, 0.0, %v491
        %v500 = vsel %vm208, 0.0, %v492
        %v501 = vld [vmem:[%s117] sm:$0xff]
        %v502 = vld [vmem:[%s117 + $0x8] sm:$0xff]
        %505 = vst [vmem:[#allocation1] ss:$2 sm:$0xff] %v501
        %s506 = scalar_lea.vmem [#allocation1], 16
        %507 = vst [vmem:[%s506] ss:$2 sm:$0xff] %v502
        %v508 = vld.sshfl [vmem:[#allocation1] sm:$0xff pattern:$0x75316420]
        %v509 = vld.sshfl [vmem:[#allocation1 + $0x8] sm:$0xff pattern:$0x75316420]
        %v510 = vld.sshfl [vmem:[#allocation1 + $0x10] sm:$0xff pattern:$0x75316420]
        %v511 = vld.sshfl [vmem:[#allocation1 + $0x18] sm:$0xff pattern:$0x75316420]
        %v516 = vsel %vm217, %v508, %v497
        %v517 = vsel %vm218, %v509, %v498
        %v518 = vsel %vm219, %v510, %v499
        %v519 = vsel %vm220, %v511, %v500
        %v520 = vld [vmem:[%s356] sm:$0xff]
        %v521 = vld [vmem:[%s356 + $0x8] sm:$0xff]
        %524 = vst [vmem:[#allocation1] ss:$2 sm:$0xff] %v520
        %s525 = scalar_lea.vmem [#allocation1], 16
        %526 = vst [vmem:[%s525] ss:$2 sm:$0xff] %v521
        %v527 = vld.sshfl [vmem:[#allocation1] sm:$0xff pattern:$0x75316420]
        %v528 = vld.sshfl [vmem:[#allocation1 + $0x8] sm:$0xff pattern:$0x75316420]
        %v529 = vld.sshfl [vmem:[#allocation1 + $0x10] sm:$0xff pattern:$0x75316420]
        %v530 = vld.sshfl [vmem:[#allocation1 + $0x18] sm:$0xff pattern:$0x75316420]
        %v535 = vsel %vm229, %v527, %v516
        %v536 = vsel %vm230, %v528, %v517
        %v537 = vsel %vm231, %v529, %v518
        %v538 = vsel %vm232, %v530, %v519
        %v539 = vsel %vm241, 0.0, %v535
        %v540 = vsel %vm242, 0.0, %v536
        %v541 = vsel %vm243, 0.0, %v537
        %v542 = vsel %vm244, 0.0, %v538
        %v543 = vld [vmem:[%s332] sm:$0xff]
        %v544 = vld [vmem:[%s332 + $0x8] sm:$0xff]
        %547 = vst [vmem:[#allocation1] ss:$2 sm:$0xff] %v543
        %s548 = scalar_lea.vmem [#allocation1], 16
        %549 = vst [vmem:[%s548] ss:$2 sm:$0xff] %v544
        %v550 = vld.sshfl [vmem:[#allocation1] sm:$0xff pattern:$0x75316420]
        %v551 = vld.sshfl [vmem:[#allocation1 + $0x8] sm:$0xff pattern:$0x75316420]
        %v552 = vld.sshfl [vmem:[#allocation1 + $0x10] sm:$0xff pattern:$0x75316420]
        %v553 = vld.sshfl [vmem:[#allocation1 + $0x18] sm:$0xff pattern:$0x75316420]
        %v558 = vsel %vm277, %v550, %v539
        %v559 = vsel %vm278, %v551, %v540
        %v560 = vsel %vm279, %v552, %v541
        %v561 = vsel %vm280, %v553, %v542
        %v566 = vrot.slane %v559, 4
        %v567 = vrot.slane %v561, 4
        %v568 = vsel %vm382, %v558, %v566
        %v569 = vsel %vm382, %v560, %v567
        %s572 = scalar_lea.vmem %s136, 32 [#allocation5]
        %573 = vst [vmem:[%s572] sm:$0xff] %v568
        %574 = vst [vmem:[%s572 + $0x8] sm:$0xff] %v569
        %v575 = vld [vmem:[%s356] sm:$0xff]
        %v576 = vld [vmem:[%s356 + $0x8] sm:$0xff]
        %579 = vst [vmem:[#allocation1] ss:$2 sm:$0xff] %v575
        %s580 = scalar_lea.vmem [#allocation1], 16
        %581 = vst [vmem:[%s580] ss:$2 sm:$0xff] %v576
        %v582 = vld.sshfl [vmem:[#allocation1] sm:$0xff pattern:$0x75316420]
        %v583 = vld.sshfl [vmem:[#allocation1 + $0x8] sm:$0xff pattern:$0x75316420]
        %v584 = vld.sshfl [vmem:[#allocation1 + $0x10] sm:$0xff pattern:$0x75316420]
        %v585 = vld.sshfl [vmem:[#allocation1 + $0x18] sm:$0xff pattern:$0x75316420]
        %v590 = vsel %vm205, 0.0, %v582
        %v591 = vsel %vm206, 0.0, %v583
        %v592 = vsel %vm207, 0.0, %v584
        %v593 = vsel %vm208, 0.0, %v585
        %v594 = vld [vmem:[%s332] sm:$0xff]
        %v595 = vld [vmem:[%s332 + $0x8] sm:$0xff]
        %598 = vst [vmem:[#allocation1] ss:$2 sm:$0xff] %v594
        %s599 = scalar_lea.vmem [#allocation1], 16
        %600 = vst [vmem:[%s599] ss:$2 sm:$0xff] %v595
        %v601 = vld.sshfl [vmem:[#allocation1] sm:$0xff pattern:$0x75316420]
        %v602 = vld.sshfl [vmem:[#allocation1 + $0x8] sm:$0xff pattern:$0x75316420]
        %v603 = vld.sshfl [vmem:[#allocation1 + $0x10] sm:$0xff pattern:$0x75316420]
        %v604 = vld.sshfl [vmem:[#allocation1 + $0x18] sm:$0xff pattern:$0x75316420]
        %v609 = vsel %vm217, %v601, %v590
        %v610 = vsel %vm218, %v602, %v591
        %v611 = vsel %vm219, %v603, %v592
        %v612 = vsel %vm220, %v604, %v593
        %v613 = vsel %vm229, 0.0, %v609
        %v614 = vsel %vm230, 0.0, %v610
        %v615 = vsel %vm231, 0.0, %v611
        %v616 = vsel %vm232, 0.0, %v612
        %v617 = vld [vmem:[%s295] sm:$0xff]
        %v618 = vld [vmem:[%s295 + $0x8] sm:$0xff]
        %621 = vst [vmem:[#allocation1] ss:$2 sm:$0xff] %v617
        %s622 = scalar_lea.vmem [#allocation1], 16
        %623 = vst [vmem:[%s622] ss:$2 sm:$0xff] %v618
        %v624 = vld.sshfl [vmem:[#allocation1] sm:$0xff pattern:$0x75316420]
        %v625 = vld.sshfl [vmem:[#allocation1 + $0x8] sm:$0xff pattern:$0x75316420]
        %v626 = vld.sshfl [vmem:[#allocation1 + $0x10] sm:$0xff pattern:$0x75316420]
        %v627 = vld.sshfl [vmem:[#allocation1 + $0x18] sm:$0xff pattern:$0x75316420]
        %v632 = vsel %vm241, %v624, %v613
        %v633 = vsel %vm242, %v625, %v614
        %v634 = vsel %vm243, %v626, %v615
        %v635 = vsel %vm244, %v627, %v616
        %v636 = vld [vmem:[%s117] sm:$0xff]
        %v637 = vld [vmem:[%s117 + $0x8] sm:$0xff]
        %640 = vst [vmem:[#allocation1] ss:$2 sm:$0xff] %v636
        %s641 = scalar_lea.vmem [#allocation1], 16
        %642 = vst [vmem:[%s641] ss:$2 sm:$0xff] %v637
        %v643 = vld.sshfl [vmem:[#allocation1] sm:$0xff pattern:$0x75316420]
        %v644 = vld.sshfl [vmem:[#allocation1 + $0x8] sm:$0xff pattern:$0x75316420]
        %v645 = vld.sshfl [vmem:[#allocation1 + $0x10] sm:$0xff pattern:$0x75316420]
        %v646 = vld.sshfl [vmem:[#allocation1 + $0x18] sm:$0xff pattern:$0x75316420]
        %v651 = vsel %vm253, %v643, %v632
        %v652 = vsel %vm254, %v644, %v633
        %v653 = vsel %vm255, %v645, %v634
        %v654 = vsel %vm256, %v646, %v635
        %v659 = vrot.slane %v652, 4
        %v660 = vrot.slane %v654, 4
        %v661 = vsel %vm382, %v651, %v659
        %v662 = vsel %vm382, %v653, %v660
        %s665 = scalar_lea.vmem %s136, 48 [#allocation5]
        %666 = vst [vmem:[%s665] sm:$0xff] %v661
        %667 = vst [vmem:[%s665 + $0x8] sm:$0xff] %v662
        %s668 = sand.u32 %s52, 1
        %s669 = scalar_lea.sflag [#allocation4], %s668
        %s670 = sand.u32 %s52, 1
        %s671 = smul.addr %s670, 64
        %s672 = scalar_lea.vmem [#allocation5], %s671
        // Predicated region
        $region29: #{tpu_custom_call.1} parent=23 // pred_check
          %p673 = pneg %p62
        $region30: #{tpu_custom_call.1} parent=23 // pred_check_branch
          %675 = sbr.rel (%p673) target = $region32
        $region31: #{tpu_custom_call.1} parent=23 // pred_region
          %677 = vsyncadd %s669, 0
          %s678 = smul.addr %s18, 16
          %s679 = smul.addr %s678, 4
          %s680 = scalar_lea.hbm %s1, %s679
          %s681 = sshll.u32 %s672, 4
          %s682 = int_to_ptr.vmem [resolvable:$true] %s681
          %s683 = sshll.u32 %s680, 4
          %s684 = int_to_ptr.hbm [resolvable:$true] %s683
          %689 = dma.vmem_to_hbm [thread:$0]  %s682, 1024, %s684, %s669, 256, 256, 16
        $region32: #{tpu_custom_call.1} parent=23 // pred_fallthru
          _
      $region24: #{tpu_custom_call.1} parent=5 // pred_fallthru
        _
      %p690 = scmp.le.s32.totalorder 2, %s13
      // Predicated region
      $region33: #{tpu_custom_call.1} parent=5 // pred_check
        %p691 = pneg %p690
      $region34: #{tpu_custom_call.1} parent=5 // pred_check_branch
        %693 = sbr.rel (%p691) target = $region36
      $region35: #{tpu_custom_call.1} parent=5 // pred_region
        %s694 = ssub.s32 %s13, 2
        // Predicated region
        $region37: #{tpu_custom_call.1} parent=35 // pred_check
          %p695 = pneg %p68
        $region38: #{tpu_custom_call.1} parent=35 // pred_check_branch
          %697 = sbr.rel (%p695) target = $region40
        $region39: #{tpu_custom_call.1} parent=35 // pred_region
          %s698 = sand.u32 %s53, 1
          %s699 = scalar_lea.sflag [#allocation4], %s698
          %s700 = sand.u32 %s53, 1
          %s701 = smul.addr %s700, 64
          %s702 = scalar_lea.vmem [#allocation5], %s701
          %704 = dma.done %s699, 1024
        $region40: #{tpu_custom_call.1} parent=35 // pred_fallthru
          _
      $region36: #{tpu_custom_call.1} parent=5 // pred_fallthru
        _
    $region6: #{tpu_custom_call.1} parent=1 // loop_footer
      %s17 = sadd.s32 1, %s13
    $region7: #{tpu_custom_call.1} parent=1 // loop_footer_branch
      %12 = sbr.rel target = $region3
    $region8: #{tpu_custom_call.1} parent=1 // loop_exit
      _
    %705 = vsyncpa [#allocation3], 1
    %s706 = scalar_lea.sflag [#allocation3], 1
    %707 = vsyncpa %s706, 1
    %708 = vsyncpa [#allocation4], 1
    %s709 = scalar_lea.sflag [#allocation4], 1
    %710 = vsyncpa %s709, 1

</llo_original>
